<compile_context>
chip_gen: v6e
topology: v6e:2x2x1
jax: 0.10.0
libtpu: 0.0.40
codegen_flags: <defaults>
</compile_context>

<pallas_src>
import jax
import jax.numpy as jnp
import numpy as np
from jax.experimental import pallas as pl
from jax.experimental.pallas import tpu as pltpu


def _fused_forward_kernel(x_ref, w_ref, b_ref, out_ref):
    """x_ref:   (TB, 4) f32 VMEM   lanes 0:2 = x[:, 0, :], lanes 2:4 = x[:, 1, :]
       w_ref:   (4,)    f32 SMEM   [W00, W01, W10, W11]  (torch Linear layout, flattened)
       b_ref:   (2,)    f32 SMEM
       out_ref: (TB, 4) i32 VMEM   lanes = [top_val0, top_val1, top_idx0, top_idx1]"""
    xs0 = x_ref[:, 0:2]                       # (TB, 2) == x[:, s=0, :]
    xs1 = x_ref[:, 2:4]                       # (TB, 2) == x[:, s=1, :]

    # permute(0,2,1) + linear folded together:
    #   z_n[b, d] = x[b, 0, d] * W[n, 0] + x[b, 1, d] * W[n, 1] + bias[n]
    # K = N = 2 -> plain VPU multiply-adds with SMEM scalar weights (no MXU).
    z0 = xs0 * w_ref[0] + xs1 * w_ref[1] + b_ref[0]
    z1 = xs0 * w_ref[2] + xs1 * w_ref[3] + b_ref[1]

    # relu folded into the argmax over the N==2 features:
    #   relu(z1) > relu(z0)  <=>  z1 > max(z0, 0)        (ties -> index 0)
    idx = (z1 > jnp.maximum(z0, 0.0)).astype(jnp.int32)  # (TB, 2)

    # top-2 along the D==2 axis of the {0,1} index map: max/min + stable
    # tie-break (equal values keep order [0, 1], torch-style).
    i0 = idx[:, 0:1]                          # (TB, 1)
    i1 = idx[:, 1:2]                          # (TB, 1)
    v_hi = jnp.maximum(i0, i1)
    v_lo = jnp.minimum(i0, i1)
    first = jnp.where(i1 > i0, 1, 0).astype(jnp.int32)   # index of the larger

    lane = jax.lax.broadcasted_iota(jnp.int32, out_ref.shape, 1)
    out_ref[...] = jnp.where(lane == 0, v_hi,
                   jnp.where(lane == 1, v_lo,
                   jnp.where(lane == 2, first, 1 - first)))


def model_forward(x, weight, bias, *, block_rows=512):
    """x: (B, S=2, D=2) f32; weight: (N=2, S=2) f32 (torch layout); bias: (2,) f32.
       Returns (values, indices), each (B, 2, 1) int32."""
    B, S, D = x.shape
    N = weight.shape[0]
    assert S == 2 and D == 2 and N == 2, "kernel specialized to permute + Linear(2, 2)"

    x2d = x.reshape(B, 4)          # free, contiguous: row = [x[b,0,0], x[b,0,1], x[b,1,0], x[b,1,1]]
    w_flat = weight.reshape(4)     # [W00, W01, W10, W11]

    smem_spec = pl.BlockSpec(memory_space=pltpu.MemorySpace.SMEM)

    if B <= block_rows:
        # Small / B=1 path: single step, whole-array VMEM — pure fixed overhead,
        # adding a grid would only cost extra per-step overhead (esp. on v5e).
        packed = pl.pallas_call(
            _fused_forward_kernel,
            out_shape=jax.ShapeDtypeStruct((B, 4), jnp.int32),
            in_specs=[
                pl.BlockSpec(memory_space=pltpu.MemorySpace.VMEM),   # x (B, 4)
                smem_spec,                                           # weight (4,)
                smem_spec,                                           # bias (2,)
            ],
            out_specs=pl.BlockSpec(memory_space=pltpu.MemorySpace.VMEM),
        )(x2d, w_flat, bias)
    else:
        # Large-B path: 1-D parallel grid over batch rows (pipelined DMA/compute,
        # VMEM-bounded blocks, shards across v7x's 2 TensorCores).
        num_blocks = pl.cdiv(B, block_rows)
        Bp = num_blocks * block_rows
        if Bp != B:
            x2d = jnp.pad(x2d, ((0, Bp - B), (0, 0)))
        packed = pl.pallas_call(
            _fused_forward_kernel,
            out_shape=jax.ShapeDtypeStruct((Bp, 4), jnp.int32),
            grid=(num_blocks,),
            in_specs=[
                pl.BlockSpec((block_rows, 4), lambda i: (i, 0)),     # x tile
                smem_spec,                                           # weight (4,)
                smem_spec,                                           # bias (2,)
            ],
            out_specs=pl.BlockSpec((block_rows, 4), lambda i: (i, 0)),
            compiler_params=pltpu.CompilerParams(
                dimension_semantics=("parallel",)),
        )(x2d, w_flat, bias)
        packed = packed[:B]
        # TODO(synk): if large-B throughput ever matters, switch to the
        # lane-dense batch-on-lanes layout ((B*4//128, 128) slabs + iota-built
        # weight vregs + pltpu.roll) so more than 4 of 128 lanes do work.

    topv = packed[:, 0:2]          # (B, 2) top-2 values
    topi = packed[:, 2:4]          # (B, 2) top-2 indices
    # TODO(synk): the reference torch.topk(v4, 2) acts on the size-1 last dim
    # (k=2 > 1) and is invalid in PyTorch itself (file lives under jit_fail/);
    # we take top-2 along dim=1 (size D=2), the only axis where k=2 is legal.
    # torch would return int64 values/indices; we return int32.
    return topv.reshape(B, D, 1), topi.reshape(B, D, 1)


def _ref(xn, wn, bn):
    """NumPy reference: permute + linear + relu + argmax + top-2 along D."""
    B = xn.shape[0]
    v1 = np.transpose(xn, (0, 2, 1))                 # (B, D, S)
    v2 = v1 @ wn.T + bn                              # (B, D, N)
    x2 = np.maximum(v2, 0.0)
    v4 = np.argmax(x2, axis=-1).astype(np.int32)     # (B, D), ties -> 0
    i0, i1 = v4[:, 0:1], v4[:, 1:2]
    vals = np.concatenate([np.maximum(i0, i1), np.minimum(i0, i1)], axis=1)
    first = (i1 > i0).astype(np.int32)
    inds = np.concatenate([first, 1 - first], axis=1)
    return vals.reshape(B, 2, 1), inds.reshape(B, 2, 1)


if __name__ == "__main__":
    key = jax.random.PRNGKey(0)
    kx, kw, kb, kx2 = jax.random.split(key, 4)

    # shapes implied by the module: x1 (1, 2, 2), Linear(2, 2)
    weight = jax.random.normal(kw, (2, 2), dtype=jnp.float32) * 0.5
    bias = jax.random.normal(kb, (2,), dtype=jnp.float32) * 0.5

    # module's actual shape: single-step gridless path
    x_small = jax.random.normal(kx, (1, 2, 2), dtype=jnp.float32)
    v_s, i_s = model_forward(x_small, weight, bias)

    # larger batch: exercises the pipelined / parallel-grid path
    x_big = jax.random.normal(kx2, (1536, 2, 2), dtype=jnp.float32)
    v_b, i_b = model_forward(x_big, weight, bias)

    jax.block_until_ready((v_s, i_s, v_b, i_b))

    for x, (vals, inds) in ((x_small, (v_s, i_s)), (x_big, (v_b, i_b))):
        rv, ri = _ref(np.asarray(x), np.asarray(weight), np.asarray(bias))
        np.testing.assert_array_equal(np.asarray(vals), rv)
        np.testing.assert_array_equal(np.asarray(inds), ri)

    print("KERNEL_OK")
</pallas_src>

<mosaic_0001>
module attributes {stable_mosaic.version = 11 : i64} {
  func.func @_fused_forward_kernel(%arg0: memref<1x4xf32, #tpu.memory_space<vmem>>, %arg1: memref<4xf32, #tpu.memory_space<smem>>, %arg2: memref<2xf32, #tpu.memory_space<smem>>, %arg3: memref<1x4xi32, #tpu.memory_space<vmem>>) attributes {dimension_semantics = [], scalar_prefetch = 0 : i64, scratch_operands = 0 : i64, tpu.core_type = #tpu.core_type<tc>} {
    %c0 = arith.constant 0 : index
    %c0_0 = arith.constant 0 : index
    %0 = vector.load %arg0[%c0, %c0_0] : memref<1x4xf32, #tpu.memory_space<vmem>>, vector<1x2xf32>
    %c0_1 = arith.constant 0 : index
    %c2 = arith.constant 2 : index
    %1 = vector.load %arg0[%c0_1, %c2] : memref<1x4xf32, #tpu.memory_space<vmem>>, vector<1x2xf32>
    %c0_2 = arith.constant 0 : index
    %2 = memref.load %arg1[%c0_2] : memref<4xf32, #tpu.memory_space<smem>>
    %3 = vector.broadcast %2 : f32 to vector<1x2xf32>
    %4 = arith.mulf %0, %3 : vector<1x2xf32>
    %c1 = arith.constant 1 : index
    %5 = memref.load %arg1[%c1] : memref<4xf32, #tpu.memory_space<smem>>
    %6 = vector.broadcast %5 : f32 to vector<1x2xf32>
    %7 = arith.mulf %1, %6 : vector<1x2xf32>
    %8 = arith.addf %4, %7 : vector<1x2xf32>
    %c0_3 = arith.constant 0 : index
    %9 = memref.load %arg2[%c0_3] : memref<2xf32, #tpu.memory_space<smem>>
    %10 = vector.broadcast %9 : f32 to vector<1x2xf32>
    %11 = arith.addf %8, %10 : vector<1x2xf32>
    %c2_4 = arith.constant 2 : index
    %12 = memref.load %arg1[%c2_4] : memref<4xf32, #tpu.memory_space<smem>>
    %13 = vector.broadcast %12 : f32 to vector<1x2xf32>
    %14 = arith.mulf %0, %13 : vector<1x2xf32>
    %c3 = arith.constant 3 : index
    %15 = memref.load %arg1[%c3] : memref<4xf32, #tpu.memory_space<smem>>
    %16 = vector.broadcast %15 : f32 to vector<1x2xf32>
    %17 = arith.mulf %1, %16 : vector<1x2xf32>
    %18 = arith.addf %14, %17 : vector<1x2xf32>
    %c1_5 = arith.constant 1 : index
    %19 = memref.load %arg2[%c1_5] : memref<2xf32, #tpu.memory_space<smem>>
    %20 = vector.broadcast %19 : f32 to vector<1x2xf32>
    %21 = arith.addf %18, %20 : vector<1x2xf32>
    %cst = arith.constant 0.000000e+00 : f32
    %22 = vector.broadcast %cst : f32 to vector<1x2xf32>
    %23 = arith.maximumf %11, %22 : vector<1x2xf32>
    %24 = arith.cmpf ogt, %21, %23 : vector<1x2xf32>
    %25 = arith.extui %24 : vector<1x2xi1> to vector<1x2xi32>
    %26 = vector.extract_strided_slice %25 {offsets = [0, 0], sizes = [1, 1], strides = [1, 1]} : vector<1x2xi32> to vector<1x1xi32>
    %27 = vector.extract_strided_slice %25 {offsets = [0, 1], sizes = [1, 1], strides = [1, 1]} : vector<1x2xi32> to vector<1x1xi32>
    %28 = arith.maxsi %26, %27 : vector<1x1xi32>
    %29 = arith.minsi %26, %27 : vector<1x1xi32>
    %30 = arith.cmpi sgt, %27, %26 : vector<1x1xi32>
    %c1_i32 = arith.constant 1 : i32
    %c0_i32 = arith.constant 0 : i32
    %31 = vector.broadcast %c1_i32 : i32 to vector<1x1xi32>
    %32 = vector.broadcast %c0_i32 : i32 to vector<1x1xi32>
    %33 = arith.select %30, %31, %32 : vector<1x1xi1>, vector<1x1xi32>
    %34 = tpu.iota {dimensions = array<i32: 1>} : vector<1x4xi32>
    %c0_i32_6 = arith.constant 0 : i32
    %35 = vector.broadcast %c0_i32_6 : i32 to vector<1x4xi32>
    %36 = arith.cmpi eq, %34, %35 : vector<1x4xi32>
    %c1_i32_7 = arith.constant 1 : i32
    %37 = vector.broadcast %c1_i32_7 : i32 to vector<1x4xi32>
    %38 = arith.cmpi eq, %34, %37 : vector<1x4xi32>
    %c2_i32 = arith.constant 2 : i32
    %39 = vector.broadcast %c2_i32 : i32 to vector<1x4xi32>
    %40 = arith.cmpi eq, %34, %39 : vector<1x4xi32>
    %c1_i32_8 = arith.constant 1 : i32
    %41 = vector.broadcast %c1_i32_8 : i32 to vector<1x1xi32>
    %42 = arith.subi %41, %33 : vector<1x1xi32>
    %43 = vector.shape_cast %33 : vector<1x1xi32> to vector<1x1xi32>
    %44 = vector.broadcast %43 : vector<1x1xi32> to vector<1x4xi32>
    %45 = vector.shape_cast %42 : vector<1x1xi32> to vector<1x1xi32>
    %46 = vector.broadcast %45 : vector<1x1xi32> to vector<1x4xi32>
    %47 = arith.select %40, %44, %46 : vector<1x4xi1>, vector<1x4xi32>
    %48 = vector.shape_cast %29 : vector<1x1xi32> to vector<1x1xi32>
    %49 = vector.broadcast %48 : vector<1x1xi32> to vector<1x4xi32>
    %50 = arith.select %38, %49, %47 : vector<1x4xi1>, vector<1x4xi32>
    %51 = vector.shape_cast %28 : vector<1x1xi32> to vector<1x1xi32>
    %52 = vector.broadcast %51 : vector<1x1xi32> to vector<1x4xi32>
    %53 = arith.select %36, %52, %50 : vector<1x4xi1>, vector<1x4xi32>
    %c0_9 = arith.constant 0 : index
    %c0_10 = arith.constant 0 : index
    %54 = vector.load %arg3[%c0_9, %c0_10] : memref<1x4xi32, #tpu.memory_space<vmem>>, vector<1x4xi32>
    tpu.vector_store %arg3[%c0_9, %c0_10], %53 {strides = array<i32>} : memref<1x4xi32, #tpu.memory_space<vmem>>, vector<1x4xi32>,
    return
  }
}

</mosaic_0001>

<llo_original>
// kernel: tpu_custom_call.1
$region0: #{tpu_custom_call.1}
  #allocation0 [shape = 'u32[]', space=smem, size = 0x4, offset = 0x4, fixed_abs, tag = 'smem constant byte address 0x4 - core index']
  #allocation1 [shape = 'u32[144,128]{1,0:T(1,128)}', space=vmem, size = 0x12000, scoped, tag = 'internal scratch']
  %s0 = inlined_call_operand.hbm [shape: f32[1,4], index: 0, kind: input, shape index: {}]
  %s1 = inlined_call_operand.vmem [shape: f32[4], index: 1, kind: input, shape index: {}]
  %s2 = inlined_call_operand.vmem [shape: f32[2], index: 2, kind: input, shape index: {}]
  %s3 = inlined_call_operand.hbm [shape: s32[1,4], index: 3, kind: output, shape index: {}]
  %s4 = sld [smem:[#allocation0]]
  $region34: #{tpu_custom_call.1} parent=0
    _
  %s6 = ssub.s32 1, %s4
  %s7 = scalar_select 0, %s6, %s4
  $region1: #{tpu_custom_call.1} parent=0
    #allocation2 [shape = 'u8[512]{0}', space=vmem, size = 0x400, scoped, tag = 'input window, operand 0, single buffered']
    #allocation3 [shape = 's32[1]{0}', space=sflag, size = 0x4, scoped, tag = 'scoped memory for tpu_custom_call.1']
    #allocation4 [shape = 's32[1]{0}', space=sflag, size = 0x4, scoped, tag = 'scoped memory for tpu_custom_call.1']
    #allocation5 [shape = 's32[1]{0}', space=sflag, size = 0x4, scoped, tag = 'scoped memory for tpu_custom_call.1']
    #allocation6 [shape = 'u8[512]{0}', space=smem, size = 0x200, scoped, tag = 'input window, operand 1, single buffered']
    #allocation7 [shape = 'u8[512]{0}', space=smem, size = 0x200, scoped, tag = 'input window, operand 2, single buffered']
    #allocation8 [shape = 's32[1]{0}', space=sflag, size = 0x4, scoped, tag = 'scoped memory for tpu_custom_call.1']
    #allocation9 [shape = 'u8[512]{0}', space=vmem, size = 0x400, scoped, tag = 'output window, operand 0, single buffered']
    %8 = vsyncpa [#allocation3], 0
    %9 = vsyncpa [#allocation5], 0
    %10 = vsyncpa [#allocation8], 0
    %11 = vsyncpa [#allocation4], 0
    // Predicated region
    $region2: #{tpu_custom_call.1} parent=1 // pred_check
      _
    $region3: #{tpu_custom_call.1} parent=1 // pred_check_branch
      %13 = sbr.rel (0) target = $region5
    $region4: #{tpu_custom_call.1} parent=1 // pred_region
      %s15 = ssub.s32 16, 16
      %16 = vsyncadd [#allocation3], %s15
      %s18 = sshll.u32 [#allocation2], 4
      %s19 = int_to_ptr.vmem [resolvable:$true] %s18
      %21 = dma.hbm_to_vmem [thread:$0]  %s0, 16, %s19, [#allocation3]
    $region5: #{tpu_custom_call.1} parent=1 // pred_fallthru
      _
    // Predicated region
    $region6: #{tpu_custom_call.1} parent=1 // pred_check
      _
    $region7: #{tpu_custom_call.1} parent=1 // pred_check_branch
      %23 = sbr.rel (0) target = $region9
    $region8: #{tpu_custom_call.1} parent=1 // pred_region
      %s25 = ssub.s32 16, 16
      %26 = vsyncadd [#allocation5], %s25
      %s28 = sshll.u32 %s1, 4
      %s29 = int_to_ptr.vmem [resolvable:$true] %s28
      %31 = dma.vmem_to_smem %s29, 16, [#allocation6], [#allocation5]
    $region9: #{tpu_custom_call.1} parent=1 // pred_fallthru
      _
    // Predicated region
    $region10: #{tpu_custom_call.1} parent=1 // pred_check
      _
    $region11: #{tpu_custom_call.1} parent=1 // pred_check_branch
      %33 = sbr.rel (0) target = $region13
    $region12: #{tpu_custom_call.1} parent=1 // pred_region
      %s35 = ssub.s32 16, 16
      %36 = vsyncadd [#allocation8], %s35
      %s38 = sshll.u32 %s2, 4
      %s39 = int_to_ptr.vmem [resolvable:$true] %s38
      %41 = dma.vmem_to_smem %s39, 16, [#allocation7], [#allocation8]
    $region13: #{tpu_custom_call.1} parent=1 // pred_fallthru
      _
    // Predicated region
    $region14: #{tpu_custom_call.1} parent=1 // pred_check
      _
    $region15: #{tpu_custom_call.1} parent=1 // pred_check_branch
      %43 = sbr.rel (0) target = $region17
    $region16: #{tpu_custom_call.1} parent=1 // pred_region
      %44 = dma.done [#allocation3], 16
    $region17: #{tpu_custom_call.1} parent=1 // pred_fallthru
      _
    // Predicated region
    $region18: #{tpu_custom_call.1} parent=1 // pred_check
      _
    $region19: #{tpu_custom_call.1} parent=1 // pred_check_branch
      %46 = sbr.rel (0) target = $region21
    $region20: #{tpu_custom_call.1} parent=1 // pred_region
      %47 = dma.done [#allocation5], 16
    $region21: #{tpu_custom_call.1} parent=1 // pred_fallthru
      _
    // Predicated region
    $region22: #{tpu_custom_call.1} parent=1 // pred_check
      _
    $region23: #{tpu_custom_call.1} parent=1 // pred_check_branch
      %49 = sbr.rel (0) target = $region25
    $region24: #{tpu_custom_call.1} parent=1 // pred_region
      %50 = dma.done [#allocation8], 16
    $region25: #{tpu_custom_call.1} parent=1 // pred_fallthru
      _
    %51 = sfence
    %v52 = vld [vmem:[#allocation2] sm:$0x1]
    %s53 = sld [smem:[#allocation6]]
    %v54 = vstv %s53
    %v55 = vmul.f32 %v52, %v54
    %s56 = sld [smem:[#allocation6 + $0x1]]
    %v57 = vstv %s56
    %v58 = vmul.f32 %v52, %v57
    %60 = vrot.lane.b32.xlu0 %v58, 126
    %v61 = vpop.permute.xlu0 %60
    %v63 = vadd.f32 %v55, %v61
    %s64 = sld [smem:[#allocation7]]
    %v65 = vstv %s64
    %v66 = vadd.f32 %v63, %v65
    %s67 = sld [smem:[#allocation6 + $0x2]]
    %v68 = vstv %s67
    %v69 = vmul.f32 %v52, %v68
    %s70 = sld [smem:[#allocation6 + $0x3]]
    %v71 = vstv %s70
    %v72 = vmul.f32 %v52, %v71
    %74 = vrot.lane.b32.xlu0 %v72, 126
    %v75 = vpop.permute.xlu0 %74
    %v77 = vadd.f32 %v69, %v75
    %s78 = sld [smem:[#allocation7 + $0x1]]
    %v79 = vstv %s78
    %v80 = vadd.f32 %v77, %v79
    %v81 = vmax.f32 %v66, 0.0
    %vm82 = vcmp.gt.f32.partialorder %v80, %v81
    %v83 = vsel %vm82, 1, 0
    %84 = vrot.lane.b32.xlu0 %v83, 127
    %v85 = vpop.permute.xlu0 %84
    %vm86 = vcmp.gt.s32.totalorder %v83, %v85
    %v87 = vsel %vm86, %v83, %v85
    %vm88 = vcmp.lt.s32.totalorder %v83, %v85
    %v89 = vsel %vm88, %v83, %v85
    %90 = vrot.lane.b32.xlu0 %v83, 1
    %v91 = vpop.permute.xlu0 %90
    %vm92 = vcmp.gt.s32.totalorder %v83, %v91
    %v93 = vsel %vm92, 1, 0
    %v94 = vlaneseq
    %v95 = vand.u32 %v94, 127
    %vm96 = vcmp.eq.s32.totalorder %v95, 0
    %vm97 = vcmp.eq.s32.totalorder %v95, 1
    %vm98 = vcmp.eq.s32.totalorder %v95, 2
    %v99 = vsub.s32 1, %v93
    %100 = vset.pattern.permute.xlu0 1
    %101 = vperm.xlu0 %100, %v93
    %v102 = vpop.permute.xlu0 %101
    %v103 = vlaneseq
    %v104 = vshrl.u32 %v103, 7
    %v105 = vsub.s32 0, %v104
    %v106 = vrot.slane %v102, %v105
    %107 = vset.pattern.permute.xlu0 1
    %108 = vperm.xlu0 %107, %v99
    %v109 = vpop.permute.xlu0 %108
    %v110 = vlaneseq
    %v111 = vshrl.u32 %v110, 7
    %v112 = vsub.s32 0, %v111
    %v113 = vrot.slane %v109, %v112
    %v114 = vsel %vm98, %v106, %v113
    %115 = vset.pattern.permute.xlu0 0
    %116 = vperm.xlu0 %115, %v89
    %v117 = vpop.permute.xlu0 %116
    %v118 = vlaneseq
    %v119 = vshrl.u32 %v118, 7
    %v120 = vsub.s32 0, %v119
    %v121 = vrot.slane %v117, %v120
    %v122 = vsel %vm97, %v121, %v114
    %123 = vset.pattern.permute.xlu0 0
    %124 = vperm.xlu0 %123, %v87
    %v125 = vpop.permute.xlu0 %124
    %v126 = vlaneseq
    %v127 = vshrl.u32 %v126, 7
    %v128 = vsub.s32 0, %v127
    %v129 = vrot.slane %v125, %v128
    %v130 = vsel %vm96, %v129, %v122
    %vm131 = vcmask 24576
    %132 = vst.msk [vmem:[#allocation9] sm:$0x1] %vm131, %v130
    // Predicated region
    $region26: #{tpu_custom_call.1} parent=1 // pred_check
      _
    $region27: #{tpu_custom_call.1} parent=1 // pred_check_branch
      %134 = sbr.rel (0) target = $region29
    $region28: #{tpu_custom_call.1} parent=1 // pred_region
      %s136 = ssub.s32 16, 16
      %137 = vsyncadd [#allocation4], %s136
      %s139 = sshll.u32 [#allocation9], 4
      %s140 = int_to_ptr.vmem [resolvable:$true] %s139
      %142 = dma.vmem_to_hbm [thread:$0]  %s140, 16, %s3, [#allocation4]
    $region29: #{tpu_custom_call.1} parent=1 // pred_fallthru
      _
    // Predicated region
    $region30: #{tpu_custom_call.1} parent=1 // pred_check
      _
    $region31: #{tpu_custom_call.1} parent=1 // pred_check_branch
      %144 = sbr.rel (0) target = $region33
    $region32: #{tpu_custom_call.1} parent=1 // pred_region
      %145 = dma.done [#allocation4], 16
    $region33: #{tpu_custom_call.1} parent=1 // pred_fallthru
      _
    %146 = vsyncpa [#allocation3], 1
    %147 = vsyncpa [#allocation4], 1
    %148 = vsyncpa [#allocation5], 1
    %149 = vsyncpa [#allocation8], 1

</llo_original>
